<compile_context>
chip_gen: v6e
topology: v6e:2x2x1
jax: 0.10.0
libtpu: 0.0.40
codegen_flags: <defaults>
</compile_context>

<pallas_src>
import functools

import jax
import jax.numpy as jnp
from jax.experimental import pallas as pl
from jax.experimental.pallas import tpu as pltpu

IN_FEATURES = 100
OUT_FEATURES = 50
BN_EPS = 1e-5


def _round_up(v, m):
    return (v + m - 1) // m * m


# ---------------------------------------------------------------------------
# Pass 1: per-row-block partial batch statistics of z = x @ W^T.
# Each grid step writes its own (1, 2, OUT) partial block -> fully parallel.
# ---------------------------------------------------------------------------
def stats_kernel(x_ref, w_ref, part_ref, *, n_rows, mask_last):
    i = pl.program_id(0)
    nb = pl.num_programs(0)
    tm = x_ref.shape[0]

    z = jnp.dot(x_ref[...], w_ref[...], preferred_element_type=jnp.float32)

    def write_partials(zv):
        part_ref[0, 0:1, :] = jnp.sum(zv, axis=0, keepdims=True)
        part_ref[0, 1:2, :] = jnp.sum(zv * zv, axis=0, keepdims=True)

    if mask_last:
        # Only the ragged last row block contains garbage (stale-VMEM) rows;
        # mask them there.  Full blocks accumulate unmasked (no per-element
        # select on the common path).
        @pl.when(i == nb - 1)
        def _ragged():
            row = jax.lax.broadcasted_iota(jnp.int32, (tm, 1), 0) + i * tm
            write_partials(jnp.where(row < n_rows, z, 0.0))

        @pl.when(i != nb - 1)
        def _full():
            write_partials(z)
    else:
        write_partials(z)


# ---------------------------------------------------------------------------
# Pass 2: recompute z = x @ W^T per block and apply the folded BN affine
# (one multiply-add per element).
# ---------------------------------------------------------------------------
def apply_kernel(x_ref, w_ref, scale_ref, shift_ref, o_ref):
    z = jnp.dot(x_ref[...], w_ref[...], preferred_element_type=jnp.float32)
    o_ref[...] = (z * scale_ref[...] + shift_ref[...]).astype(o_ref.dtype)


@functools.partial(jax.jit, static_argnames=("block_rows",))
def fused_linear_bn(x, weight, bias, gamma, beta, *, block_rows=1024):
    """x: (N, 100); weight: (50, 100) (PyTorch nn.Linear layout)."""
    n, k = x.shape
    assert k == IN_FEATURES and weight.shape == (OUT_FEATURES, IN_FEATURES)
    # The linear bias cancels exactly under training-mode BatchNorm (the batch
    # mean absorbs any per-channel constant), so it never enters the compute.
    del bias

    f32 = jnp.float32
    x = x.astype(f32)

    # Pad rows to a multiple of 8 only when necessary; padded zero rows
    # contribute nothing to the statistics and are sliced off at the end.
    # No K / output-lane padding: block dims equal to the full array dims
    # (100 / 50) are legal, so x is read straight from HBM with no repack.
    n_pad = _round_up(n, 8)
    if n_pad != n:
        x_p = jnp.zeros((n_pad, IN_FEATURES), f32).at[:n].set(x)
    else:
        x_p = x

    tm = min(_round_up(block_rows, 8), n_pad)
    nb = pl.cdiv(n_pad, tm)
    ragged = (nb * tm != n_pad)

    w_t = weight.astype(f32).T  # (100, 50): tiny, stays resident in VMEM.

    cparams = pltpu.CompilerParams(
        dimension_semantics=("parallel",),            # v7x: shard row blocks over 2 TCs
        vmem_limit_bytes=32 * 1024 * 1024)

    # --- Pass 1: per-block partial sum(z), sum(z^2) --------------------------
    partials = pl.pallas_call(
        functools.partial(stats_kernel, n_rows=n, mask_last=ragged),
        out_shape=jax.ShapeDtypeStruct((nb, 2, OUT_FEATURES), f32),
        grid=(nb,),
        in_specs=[
            pl.BlockSpec((tm, IN_FEATURES), lambda i: (i, 0)),            # x
            pl.BlockSpec((IN_FEATURES, OUT_FEATURES), lambda i: (0, 0)),  # W^T
        ],
        out_specs=pl.BlockSpec((1, 2, OUT_FEATURES), lambda i: (i, 0, 0)),
        compiler_params=cparams,
    )(x_p, w_t)

    # --- Fold BN into one per-column scale/shift (tiny, plain JAX) -----------
    totals = jnp.sum(partials, axis=0)                # (2, OUT)
    mean = totals[0] / n
    var = totals[1] / n - mean * mean                  # biased (training-mode BN)
    scale = gamma.astype(f32) * jax.lax.rsqrt(var + BN_EPS)
    shift = beta.astype(f32) - mean * scale

    # --- Pass 2: recompute z per block, apply folded affine, lane-direct out -
    out = pl.pallas_call(
        apply_kernel,
        out_shape=jax.ShapeDtypeStruct((n_pad, OUT_FEATURES), f32),
        grid=(nb,),
        in_specs=[
            pl.BlockSpec((tm, IN_FEATURES), lambda i: (i, 0)),            # x
            pl.BlockSpec((IN_FEATURES, OUT_FEATURES), lambda i: (0, 0)),  # W^T
            pl.BlockSpec((1, OUT_FEATURES), lambda i: (0, 0)),            # scale
            pl.BlockSpec((1, OUT_FEATURES), lambda i: (0, 0)),            # shift
        ],
        out_specs=pl.BlockSpec((tm, OUT_FEATURES), lambda i: (i, 0)),
        compiler_params=cparams,
    )(x_p, w_t, scale.reshape(1, OUT_FEATURES), shift.reshape(1, OUT_FEATURES))

    return out[:n] if n_pad != n else out


if __name__ == "__main__":
    key = jax.random.PRNGKey(0)
    k_x, k_w, k_b, k_g, k_be = jax.random.split(key, 5)

    # Batch of 28 (deliberately not a multiple of 8) exercises row padding;
    # block_rows=8 exercises the multi-block parallel path; block_rows=24
    # exercises the ragged-last-block masking path.
    N = 28

    x = jax.random.normal(k_x, (N, IN_FEATURES), dtype=jnp.float32)

    bound = 1.0 / (IN_FEATURES ** 0.5)
    weight = jax.random.uniform(
        k_w, (OUT_FEATURES, IN_FEATURES), minval=-bound, maxval=bound,
        dtype=jnp.float32)
    bias = jax.random.uniform(
        k_b, (OUT_FEATURES,), minval=-bound, maxval=bound, dtype=jnp.float32)
    # nn.BatchNorm1d affine params (fresh model has ones/zeros; random values
    # make the test stronger and keep identical forward semantics).
    gamma = 1.0 + 0.1 * jax.random.normal(k_g, (OUT_FEATURES,), dtype=jnp.float32)
    beta = 0.1 * jax.random.normal(k_be, (OUT_FEATURES,), dtype=jnp.float32)

    out_single = jax.block_until_ready(
        fused_linear_bn(x, weight, bias, gamma, beta))                    # 1 block
    out_multi = jax.block_until_ready(
        fused_linear_bn(x, weight, bias, gamma, beta, block_rows=8))      # 4 blocks
    out_ragged = jax.block_until_ready(
        fused_linear_bn(x, weight, bias, gamma, beta, block_rows=24))     # ragged

    # Pure-JAX reference (PyTorch training-mode BN: biased batch variance).
    y_ref = x @ weight.T + bias
    mu = y_ref.mean(axis=0, keepdims=True)
    var = ((y_ref - mu) ** 2).mean(axis=0, keepdims=True)
    ref = (y_ref - mu) / jnp.sqrt(var + BN_EPS) * gamma + beta

    for o in (out_single, out_multi, out_ragged):
        assert o.shape == (N, OUT_FEATURES)
        assert jnp.allclose(o, ref, atol=1e-4, rtol=1e-4)

    print("KERNEL_OK")
</pallas_src>

<mosaic_0001>
module attributes {stable_mosaic.version = 11 : i64} {
  func.func @stats_kernel(%arg0: i32, %arg1: memref<32x100xf32, #tpu.memory_space<vmem>>, %arg2: memref<100x50xf32, #tpu.memory_space<vmem>>, %arg3: memref<1x2x50xf32, #tpu.memory_space<vmem>>) attributes {dimension_semantics = [#tpu.dimension_semantics<parallel>], iteration_bounds = array<i64: 1>, scalar_prefetch = 0 : i64, scratch_operands = 0 : i64, tpu.core_type = #tpu.core_type<tc>, window_params = [{transform_indices = @transform_0, window_bounds = array<i64: 32, 100>}, {pipeline_mode = #tpu.pipeline_mode<synchronous>, transform_indices = @transform_1, window_bounds = array<i64: 100, 50>}, {transform_indices = @transform_2, window_bounds = array<i64: 1, 2, 50>}]} {
    %c0 = arith.constant 0 : index
    %c0_0 = arith.constant 0 : index
    %0 = vector.load %arg1[%c0, %c0_0] : memref<32x100xf32, #tpu.memory_space<vmem>>, vector<32x100xf32>
    %c0_1 = arith.constant 0 : index
    %c0_2 = arith.constant 0 : index
    %1 = vector.load %arg2[%c0_1, %c0_2] : memref<100x50xf32, #tpu.memory_space<vmem>>, vector<100x50xf32>
    %cst = arith.constant dense<0.000000e+00> : vector<32x50xf32>
    %2 = tpu.matmul %0, %1, %cst {dimension_numbers = #tpu.dot_dimension_numbers<[1], [0], [0], [1], [0, 0, 1, 1], [], []>} : vector<32x100xf32>, vector<100x50xf32>, vector<32x50xf32> -> vector<32x50xf32>
    %cst_3 = arith.constant dense<0.000000e+00> : vector<50xf32>
    %3 = vector.multi_reduction <add>, %2, %cst_3 [0] : vector<32x50xf32> to vector<50xf32>
    %4 = vector.shape_cast %3 : vector<50xf32> to vector<1x50xf32>
    %c0_4 = arith.constant 0 : index
    %c0_5 = arith.constant 0 : index
    %c0_6 = arith.constant 0 : index
    %5 = vector.load %arg3[%c0_4, %c0_5, %c0_6] : memref<1x2x50xf32, #tpu.memory_space<vmem>>, vector<1x1x50xf32>
    %6 = vector.shape_cast %5 : vector<1x1x50xf32> to vector<1x50xf32>
    %7 = vector.shape_cast %4 : vector<1x50xf32> to vector<1x1x50xf32>
    tpu.vector_store %arg3[%c0_4, %c0_5, %c0_6], %7 {strides = array<i32>} : memref<1x2x50xf32, #tpu.memory_space<vmem>>, vector<1x1x50xf32>,
    %8 = arith.mulf %2, %2 : vector<32x50xf32>
    %cst_7 = arith.constant dense<0.000000e+00> : vector<50xf32>
    %9 = vector.multi_reduction <add>, %8, %cst_7 [0] : vector<32x50xf32> to vector<50xf32>
    %10 = vector.shape_cast %9 : vector<50xf32> to vector<1x50xf32>
    %c0_8 = arith.constant 0 : index
    %c1 = arith.constant 1 : index
    %c0_9 = arith.constant 0 : index
    %11 = vector.load %arg3[%c0_8, %c1, %c0_9] : memref<1x2x50xf32, #tpu.memory_space<vmem>>, vector<1x1x50xf32>
    %12 = vector.shape_cast %11 : vector<1x1x50xf32> to vector<1x50xf32>
    %13 = vector.shape_cast %10 : vector<1x50xf32> to vector<1x1x50xf32>
    tpu.vector_store %arg3[%c0_8, %c1, %c0_9], %13 {strides = array<i32>} : memref<1x2x50xf32, #tpu.memory_space<vmem>>, vector<1x1x50xf32>,
    return
  }
  func.func @transform_0(%arg0: i32) -> (i32, i32) {
    %c0_i32 = arith.constant 0 : i32
    %c0_i32_0 = arith.constant 0 : i32
    return %arg0, %c0_i32 : i32, i32
  }
  func.func @transform_1(%arg0: i32) -> (i32, i32) {
    %c0_i32 = arith.constant 0 : i32
    %c0_i32_0 = arith.constant 0 : i32
    %c0_i32_1 = arith.constant 0 : i32
    return %c0_i32, %c0_i32_0 : i32, i32
  }
  func.func @transform_2(%arg0: i32) -> (i32, i32, i32) {
    %c0_i32 = arith.constant 0 : i32
    %c0_i32_0 = arith.constant 0 : i32
    %c0_i32_1 = arith.constant 0 : i32
    return %arg0, %c0_i32, %c0_i32_0 : i32, i32, i32
  }
}

module attributes {stable_mosaic.version = 11 : i64} {
  func.func @apply_kernel(%arg0: i32, %arg1: memref<32x100xf32, #tpu.memory_space<vmem>>, %arg2: memref<100x50xf32, #tpu.memory_space<vmem>>, %arg3: memref<1x50xf32, #tpu.memory_space<vmem>>, %arg4: memref<1x50xf32, #tpu.memory_space<vmem>>, %arg5: memref<32x50xf32, #tpu.memory_space<vmem>>) attributes {dimension_semantics = [#tpu.dimension_semantics<parallel>], iteration_bounds = array<i64: 1>, scalar_prefetch = 0 : i64, scratch_operands = 0 : i64, tpu.core_type = #tpu.core_type<tc>, window_params = [{transform_indices = @transform_0, window_bounds = array<i64: 32, 100>}, {pipeline_mode = #tpu.pipeline_mode<synchronous>, transform_indices = @transform_1, window_bounds = array<i64: 100, 50>}, {pipeline_mode = #tpu.pipeline_mode<synchronous>, transform_indices = @transform_2, window_bounds = array<i64: 1, 50>}, {pipeline_mode = #tpu.pipeline_mode<synchronous>, transform_indices = @transform_3, window_bounds = array<i64: 1, 50>}, {transform_indices = @transform_4, window_bounds = array<i64: 32, 50>}]} {
    %c0 = arith.constant 0 : index
    %c0_0 = arith.constant 0 : index
    %0 = vector.load %arg1[%c0, %c0_0] : memref<32x100xf32, #tpu.memory_space<vmem>>, vector<32x100xf32>
    %c0_1 = arith.constant 0 : index
    %c0_2 = arith.constant 0 : index
    %1 = vector.load %arg2[%c0_1, %c0_2] : memref<100x50xf32, #tpu.memory_space<vmem>>, vector<100x50xf32>
    %cst = arith.constant dense<0.000000e+00> : vector<32x50xf32>
    %2 = tpu.matmul %0, %1, %cst {dimension_numbers = #tpu.dot_dimension_numbers<[1], [0], [0], [1], [0, 0, 1, 1], [], []>} : vector<32x100xf32>, vector<100x50xf32>, vector<32x50xf32> -> vector<32x50xf32>
    %c0_3 = arith.constant 0 : index
    %c0_4 = arith.constant 0 : index
    %3 = vector.load %arg3[%c0_3, %c0_4] : memref<1x50xf32, #tpu.memory_space<vmem>>, vector<1x50xf32>
    %4 = vector.broadcast %3 : vector<1x50xf32> to vector<32x50xf32>
    %5 = arith.mulf %2, %4 : vector<32x50xf32>
    %c0_5 = arith.constant 0 : index
    %c0_6 = arith.constant 0 : index
    %6 = vector.load %arg4[%c0_5, %c0_6] : memref<1x50xf32, #tpu.memory_space<vmem>>, vector<1x50xf32>
    %7 = vector.broadcast %6 : vector<1x50xf32> to vector<32x50xf32>
    %8 = arith.addf %5, %7 : vector<32x50xf32>
    %c0_7 = arith.constant 0 : index
    %c0_8 = arith.constant 0 : index
    %9 = vector.load %arg5[%c0_7, %c0_8] : memref<32x50xf32, #tpu.memory_space<vmem>>, vector<32x50xf32>
    tpu.vector_store %arg5[%c0_7, %c0_8], %8 {strides = array<i32>} : memref<32x50xf32, #tpu.memory_space<vmem>>, vector<32x50xf32>,
    return
  }
  func.func @transform_0(%arg0: i32) -> (i32, i32) {
    %c0_i32 = arith.constant 0 : i32
    %c0_i32_0 = arith.constant 0 : i32
    return %arg0, %c0_i32 : i32, i32
  }
  func.func @transform_1(%arg0: i32) -> (i32, i32) {
    %c0_i32 = arith.constant 0 : i32
    %c0_i32_0 = arith.constant 0 : i32
    %c0_i32_1 = arith.constant 0 : i32
    return %c0_i32, %c0_i32_0 : i32, i32
  }
  func.func @transform_2(%arg0: i32) -> (i32, i32) {
    %c0_i32 = arith.constant 0 : i32
    %c0_i32_0 = arith.constant 0 : i32
    %c0_i32_1 = arith.constant 0 : i32
    return %c0_i32, %c0_i32_0 : i32, i32
  }
  func.func @transform_3(%arg0: i32) -> (i32, i32) {
    %c0_i32 = arith.constant 0 : i32
    %c0_i32_0 = arith.constant 0 : i32
    %c0_i32_1 = arith.constant 0 : i32
    return %c0_i32, %c0_i32_0 : i32, i32
  }
  func.func @transform_4(%arg0: i32) -> (i32, i32) {
    %c0_i32 = arith.constant 0 : i32
    %c0_i32_0 = arith.constant 0 : i32
    return %arg0, %c0_i32 : i32, i32
  }
}

</mosaic_0001>

<llo_original>
// kernel: fused_linear_bn.3
$region0: #{fused_linear_bn.3}
  #allocation0 [shape = 'u32[]', space=smem, size = 0x4, offset = 0x4, fixed_abs, tag = 'smem constant byte address 0x4 - core index']
  #allocation1 [shape = 'u32[144,128]{1,0:T(1,128)}', space=vmem, size = 0x12000, scoped, tag = 'internal scratch']
  %s0 = inlined_call_operand.vmem [shape: f32[32,100], index: 0, kind: input, shape index: {}]
  %s1 = inlined_call_operand.vmem [shape: f32[100,50], index: 1, kind: input, shape index: {}]
  %s2 = inlined_call_operand.vmem [shape: f32[1,50], index: 2, kind: input, shape index: {}]
  %s3 = inlined_call_operand.vmem [shape: f32[1,50], index: 3, kind: input, shape index: {}]
  %s4 = inlined_call_operand.hbm [shape: f32[32,50], index: 4, kind: output, shape index: {}]
  %s5 = sld [smem:[#allocation0]]
  $region26: #{fused_linear_bn.3} parent=0
    _
  %s7 = ssub.s32 1, %s5
  %s8 = scalar_select 0, %s7, %s5
  $region1: #{fused_linear_bn.3} parent=0
    #allocation2 [shape = 'u8[16384]{0}', space=vmem, size = 0x4000, scoped, tag = 'output window, operand 0, single buffered']
    #allocation3 [shape = 's32[1]{0}', space=sflag, size = 0x4, scoped, tag = 'scoped memory for fused_linear_bn.3']
    %9 = vsyncpa [#allocation3], 0
    // Predicated region
    $region2: #{fused_linear_bn.3} parent=1 // pred_check
      _
    $region3: #{fused_linear_bn.3} parent=1 // pred_check_branch
      %11 = sbr.rel (0) target = $region5
    $region4: #{fused_linear_bn.3} parent=1 // pred_region
      _
    $region5: #{fused_linear_bn.3} parent=1 // pred_fallthru
      _
    // Predicated region
    $region6: #{fused_linear_bn.3} parent=1 // pred_check
      _
    $region7: #{fused_linear_bn.3} parent=1 // pred_check_branch
      %13 = sbr.rel (0) target = $region9
    $region8: #{fused_linear_bn.3} parent=1 // pred_region
      _
    $region9: #{fused_linear_bn.3} parent=1 // pred_fallthru
      _
    // Predicated region
    $region10: #{fused_linear_bn.3} parent=1 // pred_check
      _
    $region11: #{fused_linear_bn.3} parent=1 // pred_check_branch
      %15 = sbr.rel (0) target = $region13
    $region12: #{fused_linear_bn.3} parent=1 // pred_region
      _
    $region13: #{fused_linear_bn.3} parent=1 // pred_fallthru
      _
    // Predicated region
    $region14: #{fused_linear_bn.3} parent=1 // pred_check
      _
    $region15: #{fused_linear_bn.3} parent=1 // pred_check_branch
      %17 = sbr.rel (0) target = $region17
    $region16: #{fused_linear_bn.3} parent=1 // pred_region
      _
    $region17: #{fused_linear_bn.3} parent=1 // pred_fallthru
      _
    %v18 = vld [vmem:[%s0] sm:$0xff]
    %v19 = vld [vmem:[%s0 + $0x8] sm:$0xff]
    %v20 = vld [vmem:[%s0 + $0x10] sm:$0xff]
    %v21 = vld [vmem:[%s0 + $0x18] sm:$0xff]
    %v22 = vld [vmem:[%s1] sm:$0xff]
    %v23 = vld [vmem:[%s1 + $0x8] sm:$0xff]
    %v24 = vld [vmem:[%s1 + $0x10] sm:$0xff]
    %v25 = vld [vmem:[%s1 + $0x18] sm:$0xff]
    %v26 = vld [vmem:[%s1 + $0x20] sm:$0xff]
    %v27 = vld [vmem:[%s1 + $0x28] sm:$0xff]
    %v28 = vld [vmem:[%s1 + $0x30] sm:$0xff]
    %v29 = vld [vmem:[%s1 + $0x38] sm:$0xff]
    %v30 = vld [vmem:[%s1 + $0x40] sm:$0xff]
    %v31 = vld [vmem:[%s1 + $0x48] sm:$0xff]
    %v32 = vld [vmem:[%s1 + $0x50] sm:$0xff]
    %v33 = vld [vmem:[%s1 + $0x58] sm:$0xff]
    %v34 = vld [vmem:[%s1 + $0x60] sm:$0xf]
    %vm35 = vcmask 818176
    %v37 = vsel %vm35, %v18, 0
    %v40 = vsel %vm35, %v19, 0
    %v43 = vsel %vm35, %v20, 0
    %v46 = vsel %vm35, %v21, 0
    %vm48 = vcmask 1043456
    %v50 = vsel %vm48, %v34, 0
    %52 = vmatprep.subr.mxu0 0.0
    %53 = vmatpush1.msra.mxu0 0.0
    %54 = vmatprep.subr.mxu0 0.0
    %55 = vmatpush1.msra.mxu0 0.0
    %56 = vmatprep.subr.mxu0 0.0
    %57 = vmatpush1.msra.mxu0 0.0
    %58 = vmatprep.subr.mxu0 0.0
    %59 = vmatpush1.msra.mxu0 %v50
    %60 = vmatprep.subr.mxu0 0.0
    %61 = vmatpush1.msra.mxu0 %v33
    %62 = vmatprep.subr.mxu0 0.0
    %63 = vmatpush1.msra.mxu0 %v32
    %64 = vmatprep.subr.mxu0 0.0
    %65 = vmatpush1.msra.mxu0 %v31
    %66 = vmatprep.subr.mxu0 0.0
    %67 = vmatpush1.msra.mxu0 %v30
    %68 = vmatprep.subr.mxu0 0.0
    %69 = vmatpush1.msra.mxu0 %v29
    %70 = vmatprep.subr.mxu0 0.0
    %71 = vmatpush1.msra.mxu0 %v28
    %72 = vmatprep.subr.mxu0 0.0
    %73 = vmatpush1.msra.mxu0 %v27
    %74 = vmatprep.subr.mxu0 0.0
    %75 = vmatpush1.msra.mxu0 %v26
    %76 = vmatprep.subr.mxu0 0.0
    %77 = vmatpush1.msra.mxu0 %v25
    %78 = vmatprep.subr.mxu0 0.0
    %79 = vmatpush1.msra.mxu0 %v24
    %80 = vmatprep.subr.mxu0 0.0
    %81 = vmatpush1.msra.mxu0 %v23
    %82 = vmatprep.subr.mxu0 0.0
    %83 = vmatpush1.msra.mxu0 %v22
    %84 = vmatprep.subr.mxu0 0.0
    %85 = vmatpush2.msra.mxu0 0.0
    %86 = vmatprep.subr.mxu0 0.0
    %87 = vmatpush2.msra.mxu0 0.0
    %88 = vmatprep.subr.mxu0 0.0
    %89 = vmatpush2.msra.mxu0 0.0
    %90 = vmatprep.subr.mxu0 0.0
    %91 = vmatpush2.msra.mxu0 0.0
    %92 = vmatprep.subr.mxu0 0.0
    %93 = vmatpush2.msra.mxu0 0.0
    %94 = vmatprep.subr.mxu0 0.0
    %95 = vmatpush2.msra.mxu0 0.0
    %96 = vmatprep.subr.mxu0 0.0
    %97 = vmatpush2.msra.mxu0 0.0
    %98 = vmatprep.subr.mxu0 0.0
    %99 = vmatpush2.msra.mxu0 0.0
    %100 = vmatprep.subr.mxu0 0.0
    %101 = vmatpush2.msra.mxu0 0.0
    %102 = vmatprep.subr.mxu0 0.0
    %103 = vmatpush2.msra.mxu0 0.0
    %104 = vmatprep.subr.mxu0 0.0
    %105 = vmatpush2.msra.mxu0 0.0
    %106 = vmatprep.subr.mxu0 0.0
    %107 = vmatpush2.msra.mxu0 0.0
    %108 = vmatprep.subr.mxu0 0.0
    %109 = vmatpush2.msra.mxu0 0.0
    %110 = vmatprep.subr.mxu0 0.0
    %111 = vmatpush2.msra.mxu0 0.0
    %112 = vmatprep.subr.mxu0 0.0
    %113 = vmatpush2.msra.mxu0 0.0
    %114 = vmatprep.subr.mxu0 0.0
    %115 = vmatpush2.msra.mxu0 0.0
    %116 = vmatprep.mubr.f32.mxu0 0.0
    %117 = vmatmul.mubr.f32.gmra.mxu0 %v37
    %v118 = vpop.f32.mrf.mxu0
    %v119 = vadd.f32 0.0, %v118
    %v120 = vpop.f32.mrf.mxu0
    %121 = vmatprep.mubr.f32.mxu0 0.0
    %122 = vmatmul.mubr.f32.gmra.mxu0 %v40
    %v123 = vpop.f32.mrf.mxu0
    %v124 = vadd.f32 0.0, %v123
    %v125 = vpop.f32.mrf.mxu0
    %126 = vmatprep.mubr.f32.mxu0 0.0
    %127 = vmatmul.mubr.f32.gmra.mxu0 %v43
    %v128 = vpop.f32.mrf.mxu0
    %v129 = vadd.f32 0.0, %v128
    %v130 = vpop.f32.mrf.mxu0
    %131 = vmatprep.mubr.f32.mxu0 0.0
    %132 = vmatmul.mubr.f32.gmra.mxu0 %v46
    %v133 = vpop.f32.mrf.mxu0
    %v134 = vadd.f32 0.0, %v133
    %v135 = vpop.f32.mrf.mxu0
    %136 = vdwg.mxu0
    %v137 = vld [vmem:[%s2] sm:$0x1]
    %v139 = vlaneseq
    %v140 = vshrl.u32 %v139, 7
    %v141 = vsub.s32 0, %v140
    %v142 = vrot.slane %v137, %v141
    %v144 = vmul.f32 %v119, %v142
    %v145 = vmul.f32 %v124, %v142
    %v146 = vmul.f32 %v129, %v142
    %v147 = vmul.f32 %v134, %v142
    %v148 = vld [vmem:[%s3] sm:$0x1]
    %v150 = vlaneseq
    %v151 = vshrl.u32 %v150, 7
    %v152 = vsub.s32 0, %v151
    %v153 = vrot.slane %v148, %v152
    %v155 = vadd.f32 %v144, %v153
    %v156 = vadd.f32 %v145, %v153
    %v157 = vadd.f32 %v146, %v153
    %v158 = vadd.f32 %v147, %v153
    %vm159 = vcmask 408576
    %160 = vst.msk [vmem:[#allocation2] sm:$0xff] %vm159, %v155
    %161 = vst.msk [vmem:[#allocation2 + $0x8] sm:$0xff] %vm159, %v156
    %162 = vst.msk [vmem:[#allocation2 + $0x10] sm:$0xff] %vm159, %v157
    %163 = vst.msk [vmem:[#allocation2 + $0x18] sm:$0xff] %vm159, %v158
    // Predicated region
    $region18: #{fused_linear_bn.3} parent=1 // pred_check
      _
    $region19: #{fused_linear_bn.3} parent=1 // pred_check_branch
      %165 = sbr.rel (0) target = $region21
    $region20: #{fused_linear_bn.3} parent=1 // pred_region
      %s167 = ssub.s32 512, 512
      %168 = vsyncadd [#allocation3], %s167
      %s169 = sshll.u32 [#allocation2], 4
      %s170 = int_to_ptr.vmem [resolvable:$true] %s169
      %175 = dma.vmem_to_hbm [thread:$0]  %s170, 512, %s4, [#allocation3], 128, 128, 8
    $region21: #{fused_linear_bn.3} parent=1 // pred_fallthru
      _
    // Predicated region
    $region22: #{fused_linear_bn.3} parent=1 // pred_check
      _
    $region23: #{fused_linear_bn.3} parent=1 // pred_check_branch
      %177 = sbr.rel (0) target = $region25
    $region24: #{fused_linear_bn.3} parent=1 // pred_region
      %178 = dma.done [#allocation3], 512
    $region25: #{fused_linear_bn.3} parent=1 // pred_fallthru
      _
    %179 = vsyncpa [#allocation3], 1

// kernel: fused_linear_bn.2
$region0: #{fused_linear_bn.2}
  #allocation0 [shape = 'u32[]', space=smem, size = 0x4, offset = 0x4, fixed_abs, tag = 'smem constant byte address 0x4 - core index']
  #allocation1 [shape = 'u32[144,128]{1,0:T(1,128)}', space=vmem, size = 0x12000, scoped, tag = 'internal scratch']
  %s0 = inlined_call_operand.vmem [shape: f32[32,100], index: 0, kind: input, shape index: {}]
  %s1 = inlined_call_operand.vmem [shape: f32[100,50], index: 1, kind: input, shape index: {}]
  %s2 = inlined_call_operand.vmem [shape: f32[1,2,50], index: 2, kind: output, shape index: {}]
  %s3 = sld [smem:[#allocation0]]
  $region18: #{fused_linear_bn.2} parent=0
    _
  %s5 = ssub.s32 1, %s3
  %s6 = scalar_select 0, %s5, %s3
  // Predicated region
  $region2: #{fused_linear_bn.2} parent=0 // pred_check
    _
  $region3: #{fused_linear_bn.2} parent=0 // pred_check_branch
    %8 = sbr.rel (0) target = $region5
  $region4: #{fused_linear_bn.2} parent=0 // pred_region
    _
  $region5: #{fused_linear_bn.2} parent=0 // pred_fallthru
    _
  // Predicated region
  $region6: #{fused_linear_bn.2} parent=0 // pred_check
    _
  $region7: #{fused_linear_bn.2} parent=0 // pred_check_branch
    %10 = sbr.rel (0) target = $region9
  $region8: #{fused_linear_bn.2} parent=0 // pred_region
    _
  $region9: #{fused_linear_bn.2} parent=0 // pred_fallthru
    _
  %v11 = vld [vmem:[%s0] sm:$0xff]
  %v12 = vld [vmem:[%s0 + $0x8] sm:$0xff]
  %v13 = vld [vmem:[%s0 + $0x10] sm:$0xff]
  %v14 = vld [vmem:[%s0 + $0x18] sm:$0xff]
  %v15 = vld [vmem:[%s1] sm:$0xff]
  %v16 = vld [vmem:[%s1 + $0x8] sm:$0xff]
  %v17 = vld [vmem:[%s1 + $0x10] sm:$0xff]
  %v18 = vld [vmem:[%s1 + $0x18] sm:$0xff]
  %v19 = vld [vmem:[%s1 + $0x20] sm:$0xff]
  %v20 = vld [vmem:[%s1 + $0x28] sm:$0xff]
  %v21 = vld [vmem:[%s1 + $0x30] sm:$0xff]
  %v22 = vld [vmem:[%s1 + $0x38] sm:$0xff]
  %v23 = vld [vmem:[%s1 + $0x40] sm:$0xff]
  %v24 = vld [vmem:[%s1 + $0x48] sm:$0xff]
  %v25 = vld [vmem:[%s1 + $0x50] sm:$0xff]
  %v26 = vld [vmem:[%s1 + $0x58] sm:$0xff]
  %v27 = vld [vmem:[%s1 + $0x60] sm:$0xf]
  %vm28 = vcmask 818176
  %v30 = vsel %vm28, %v11, 0
  %v33 = vsel %vm28, %v12, 0
  %v36 = vsel %vm28, %v13, 0
  %v39 = vsel %vm28, %v14, 0
  %vm41 = vcmask 1043456
  %v43 = vsel %vm41, %v27, 0
  %45 = vmatprep.subr.mxu0 0.0
  %46 = vmatpush1.msra.mxu0 0.0
  %47 = vmatprep.subr.mxu0 0.0
  %48 = vmatpush1.msra.mxu0 0.0
  %49 = vmatprep.subr.mxu0 0.0
  %50 = vmatpush1.msra.mxu0 0.0
  %51 = vmatprep.subr.mxu0 0.0
  %52 = vmatpush1.msra.mxu0 %v43
  %53 = vmatprep.subr.mxu0 0.0
  %54 = vmatpush1.msra.mxu0 %v26
  %55 = vmatprep.subr.mxu0 0.0
  %56 = vmatpush1.msra.mxu0 %v25
  %57 = vmatprep.subr.mxu0 0.0
  %58 = vmatpush1.msra.mxu0 %v24
  %59 = vmatprep.subr.mxu0 0.0
  %60 = vmatpush1.msra.mxu0 %v23
  %61 = vmatprep.subr.mxu0 0.0
  %62 = vmatpush1.msra.mxu0 %v22
  %63 = vmatprep.subr.mxu0 0.0
  %64 = vmatpush1.msra.mxu0 %v21
  %65 = vmatprep.subr.mxu0 0.0
  %66 = vmatpush1.msra.mxu0 %v20
  %67 = vmatprep.subr.mxu0 0.0
  %68 = vmatpush1.msra.mxu0 %v19
  %69 = vmatprep.subr.mxu0 0.0
  %70 = vmatpush1.msra.mxu0 %v18
  %71 = vmatprep.subr.mxu0 0.0
  %72 = vmatpush1.msra.mxu0 %v17
  %73 = vmatprep.subr.mxu0 0.0
  %74 = vmatpush1.msra.mxu0 %v16
  %75 = vmatprep.subr.mxu0 0.0
  %76 = vmatpush1.msra.mxu0 %v15
  %77 = vmatprep.subr.mxu0 0.0
  %78 = vmatpush2.msra.mxu0 0.0
  %79 = vmatprep.subr.mxu0 0.0
  %80 = vmatpush2.msra.mxu0 0.0
  %81 = vmatprep.subr.mxu0 0.0
  %82 = vmatpush2.msra.mxu0 0.0
  %83 = vmatprep.subr.mxu0 0.0
  %84 = vmatpush2.msra.mxu0 0.0
  %85 = vmatprep.subr.mxu0 0.0
  %86 = vmatpush2.msra.mxu0 0.0
  %87 = vmatprep.subr.mxu0 0.0
  %88 = vmatpush2.msra.mxu0 0.0
  %89 = vmatprep.subr.mxu0 0.0
  %90 = vmatpush2.msra.mxu0 0.0
  %91 = vmatprep.subr.mxu0 0.0
  %92 = vmatpush2.msra.mxu0 0.0
  %93 = vmatprep.subr.mxu0 0.0
  %94 = vmatpush2.msra.mxu0 0.0
  %95 = vmatprep.subr.mxu0 0.0
  %96 = vmatpush2.msra.mxu0 0.0
  %97 = vmatprep.subr.mxu0 0.0
  %98 = vmatpush2.msra.mxu0 0.0
  %99 = vmatprep.subr.mxu0 0.0
  %100 = vmatpush2.msra.mxu0 0.0
  %101 = vmatprep.subr.mxu0 0.0
  %102 = vmatpush2.msra.mxu0 0.0
  %103 = vmatprep.subr.mxu0 0.0
  %104 = vmatpush2.msra.mxu0 0.0
  %105 = vmatprep.subr.mxu0 0.0
  %106 = vmatpush2.msra.mxu0 0.0
  %107 = vmatprep.subr.mxu0 0.0
  %108 = vmatpush2.msra.mxu0 0.0
  %109 = vmatprep.mubr.f32.mxu0 0.0
  %110 = vmatmul.mubr.f32.gmra.mxu0 %v30
  %v111 = vpop.f32.mrf.mxu0
  %v112 = vadd.f32 0.0, %v111
  %v113 = vpop.f32.mrf.mxu0
  %114 = vmatprep.mubr.f32.mxu0 0.0
  %115 = vmatmul.mubr.f32.gmra.mxu0 %v33
  %v116 = vpop.f32.mrf.mxu0
  %v117 = vadd.f32 0.0, %v116
  %v118 = vpop.f32.mrf.mxu0
  %119 = vmatprep.mubr.f32.mxu0 0.0
  %120 = vmatmul.mubr.f32.gmra.mxu0 %v36
  %v121 = vpop.f32.mrf.mxu0
  %v122 = vadd.f32 0.0, %v121
  %v123 = vpop.f32.mrf.mxu0
  %124 = vmatprep.mubr.f32.mxu0 0.0
  %125 = vmatmul.mubr.f32.gmra.mxu0 %v39
  %v126 = vpop.f32.mrf.mxu0
  %v127 = vadd.f32 0.0, %v126
  %v128 = vpop.f32.mrf.mxu0
  %129 = vdwg.mxu0
  %vm130 = vcmask 408576
  %v131 = vsel %vm130, %v112, 0.0
  %v132 = vsel %vm130, %v117, 0.0
  %v133 = vadd.f32 %v131, %v132
  %v134 = vsel %vm130, %v122, 0.0
  %v135 = vadd.f32 %v133, %v134
  %v136 = vsel %vm130, %v127, 0.0
  %v137 = vadd.f32 %v135, %v136
  %v138 = vrot.slane %v137, 4
  %v139 = vadd.f32 %v137, %v138
  %v140 = vrot.slane %v139, 2
  %v141 = vadd.f32 %v139, %v140
  %v142 = vrot.slane %v141, 1
  %v143 = vadd.f32 %v141, %v142
  %vm144 = vcmask 401408
  %145 = vst.msk [vmem:[%s2] sm:$0x1] %vm144, %v143
  %v146 = vmul.f32 %v112, %v112
  %v147 = vmul.f32 %v117, %v117
  %v148 = vmul.f32 %v122, %v122
  %v149 = vmul.f32 %v127, %v127
  %v150 = vsel %vm130, %v146, 0.0
  %v151 = vsel %vm130, %v147, 0.0
  %v152 = vadd.f32 %v150, %v151
  %v153 = vsel %vm130, %v148, 0.0
  %v154 = vadd.f32 %v152, %v153
  %v155 = vsel %vm130, %v149, 0.0
  %v156 = vadd.f32 %v154, %v155
  %v157 = vrot.slane %v156, 4
  %v158 = vadd.f32 %v156, %v157
  %v159 = vrot.slane %v158, 2
  %v160 = vadd.f32 %v158, %v159
  %v161 = vrot.slane %v160, 1
  %v162 = vadd.f32 %v160, %v161
  %163 = vst.msk [vmem:[%s2 + $0x1] sm:$0x1] %vm144, %v162
  // Predicated region
  $region10: #{fused_linear_bn.2} parent=0 // pred_check
    _
  $region11: #{fused_linear_bn.2} parent=0 // pred_check_branch
    %165 = sbr.rel (0) target = $region13
  $region12: #{fused_linear_bn.2} parent=0 // pred_region
    _
  $region13: #{fused_linear_bn.2} parent=0 // pred_fallthru
    _
  // Predicated region
  $region14: #{fused_linear_bn.2} parent=0 // pred_check
    _
  $region15: #{fused_linear_bn.2} parent=0 // pred_check_branch
    %167 = sbr.rel (0) target = $region17
  $region16: #{fused_linear_bn.2} parent=0 // pred_region
    _
  $region17: #{fused_linear_bn.2} parent=0 // pred_fallthru
    _

</llo_original>
